<compile_context>
chip_gen: v5e
topology: v5e:2x2
jax: 0.10.0
libtpu: 0.0.40
codegen_flags: <defaults>
</compile_context>

<pallas_src>
import functools

import jax
import jax.numpy as jnp
from jax.experimental import pallas as pl
from jax.experimental.pallas import tpu as pltpu

LANE = 128


def _round_up(n: int, m: int) -> int:
    return ((n + m - 1) // m) * m


def mlp_kernel(x_ref, w1_ref, b1_ref, w2_ref, b2_ref, w3_ref, b3_ref, o_ref,
               h1_acc):
    """One (batch-tile, K-tile) grid step of the 3-layer MLP."""
    k = pl.program_id(1)
    nk = pl.num_programs(1)

    @pl.when(k == 0)
    def _():
        h1_acc[...] = jnp.zeros_like(h1_acc)

    # Layer 1 (partial over this input_dim tile): cast the f32 x tile to bf16
    # on the VPU right before the MXU pass; accumulate in f32 in scratch.
    # NOTE: for raw BOW count vectors with very large magnitudes, keep x f32
    # through the first matmul (slower, more MXU passes) if bf16 quantization
    # of the inputs is not acceptable.
    h1_acc[...] += jnp.dot(x_ref[...].astype(jnp.bfloat16), w1_ref[...],
                           preferred_element_type=jnp.float32)

    @pl.when(k == nk - 1)
    def _():
        # Layer-1 epilogue: bias + ReLU (f32, VPU).
        h1 = jnp.maximum(h1_acc[...] + b1_ref[...], 0.0)

        # Dropout: identity in eval/inference mode (matches model.eval()).
        # TODO(synk): training-mode dropout would use pltpu.prng_seed +
        # pltpu.prng_random_bits to build the keep mask.

        # Layer 2: Linear + ReLU.
        h2 = jnp.dot(h1.astype(jnp.bfloat16), w2_ref[...],
                     preferred_element_type=jnp.float32)
        h2 = jnp.maximum(h2 + b2_ref[...], 0.0)

        # Output layer: Linear + Sigmoid (sigmoid runs on the EUP, stays f32).
        logits = jnp.dot(h2.astype(jnp.bfloat16), w3_ref[...],
                         preferred_element_type=jnp.float32)
        logits = logits + b3_ref[...]
        probs = jax.nn.sigmoid(logits)
        # Store only the real classes: unpadded, masked store of a tiny tile.
        o_ref[...] = probs[:, : o_ref.shape[1]].astype(o_ref.dtype)


def _vmem_budget_bytes() -> int:
    """~75% of physical VMEM; conservative fallback is safe on v7x (64 MiB)."""
    try:
        cap = pltpu.get_tpu_info().vmem_capacity_bytes
        if cap:
            return int(cap) * 3 // 4
    except Exception:
        pass
    return 48 * 1024 * 1024


def _working_set_bytes(tb, tk, h1p, h2p, cp, c, k_steps):
    x_blk = 2 * tb * tk * 4                            # f32 x tile, double-buffered
    w1_blk = (2 if k_steps > 1 else 1) * tk * h1p * 2  # bf16 (streamed iff K-tiled)
    w_rest = (h1p * h2p + h2p * cp) * 2                # single-buffered bf16
    b_rest = (h1p + h2p + cp) * 4
    out_blk = 2 * tb * c * 4
    acc = tb * h1p * 4                                 # layer-1 f32 accumulator
    interm = tb * (h1p + h2p + 2 * cp) * 4             # live f32/bf16 values (approx)
    return x_blk + w1_blk + w_rest + b_rest + out_blk + acc + interm


@functools.partial(jax.jit, static_argnames=("max_batch_tile",))
def simple_linear_model(x, params, *, max_batch_tile=512):
    """x: (B, input_dim) f32 -> (B, num_classes) f32 (eval-mode forward)."""
    w1, b1, w2, b2, w3, b3 = params
    B, D = x.shape
    H1, H2, C = w1.shape[1], w2.shape[1], w3.shape[1]

    H1p, H2p, Cp = (_round_up(d, LANE) for d in (H1, H2, C))

    budget = _vmem_budget_bytes()
    target = budget * 3 // 5  # headroom for Mosaic internal scratch

    # --- batch tile selection -------------------------------------------------
    if B <= 256:
        TB = _round_up(B, 16)
    else:
        tb_cap = max(256, (max_batch_tile // 256) * 256)
        TB = min(tb_cap, 512)
        # Ensure >= 2 grid steps along the parallel axis (v7x megacore).
        while TB > 256 and (B + TB - 1) // TB < 2:
            TB //= 2

    # --- K tile over input_dim ------------------------------------------------
    TK = _round_up(D, LANE)

    def ws(tb, tk):
        k_steps = (_round_up(D, LANE) + tk - 1) // tk
        return _working_set_bytes(tb, tk, H1p, H2p, Cp, C, k_steps)

    while TK > 512 and ws(TB, TK) > target:
        TK = _round_up(TK // 2, LANE)
    while TB > 16 and ws(TB, TK) > target:
        TB = max(16, _round_up(TB // 2, 16))

    Dp = _round_up(D, TK)
    Bp = _round_up(B, TB)
    nb, nk = Bp // TB, Dp // TK

    # --- operand prep ---------------------------------------------------------
    # x kept f32 (cast to bf16 inside the kernel); pad only if misaligned.
    x_p = x if (Bp, Dp) == (B, D) else jnp.pad(x, ((0, Bp - B), (0, Dp - D)))
    x_p = x_p.astype(jnp.float32)

    def pad2(a, rows, cols, dtype):
        a = a.reshape(-1, a.shape[-1]) if a.ndim == 2 else a.reshape(1, -1)
        return jnp.pad(a, ((0, rows - a.shape[0]), (0, cols - a.shape[1]))).astype(dtype)

    w1_p = pad2(w1, Dp, H1p, jnp.bfloat16)
    w2_p = pad2(w2, H1p, H2p, jnp.bfloat16)
    w3_p = pad2(w3, H2p, Cp, jnp.bfloat16)
    b1_p = pad2(b1, 1, H1p, jnp.float32)
    b2_p = pad2(b2, 1, H2p, jnp.float32)
    b3_p = pad2(b3, 1, Cp, jnp.float32)

    # --- block specs ----------------------------------------------------------
    def resident(shape):
        # Constant index_map -> stays in VMEM across the whole grid; single
        # buffer (double-buffering a never-changing block only wastes VMEM).
        return pl.BlockSpec(shape, lambda i, k: (0, 0),
                            pipeline_mode=pl.Buffered(1))

    if nk == 1:
        w1_spec = pl.BlockSpec((TK, H1p), lambda i, k: (k, 0),
                               pipeline_mode=pl.Buffered(1))
    else:
        # Streamed along K: keep default double buffering to hide its DMA.
        w1_spec = pl.BlockSpec((TK, H1p), lambda i, k: (k, 0))

    # --- cost hint / VMEM limit ----------------------------------------------
    flops = 2 * Bp * (Dp * H1p + H1p * H2p + H2p * Cp)
    transcendentals = 2 * Bp * Cp  # sigmoid ~= exp + reciprocal per element
    bytes_accessed = (
        Bp * Dp * 4
        + (nb if nk > 1 else 1) * w1_p.size * 2
        + (w2_p.size + w3_p.size) * 2
        + (b1_p.size + b2_p.size + b3_p.size) * 4
        + Bp * C * 4
    )

    working_set = ws(TB, TK)
    vmem_limit = int(min(max(working_set * 5 // 4, 8 * 1024 * 1024), budget))

    out_p = pl.pallas_call(
        mlp_kernel,
        out_shape=jax.ShapeDtypeStruct((Bp, C), jnp.float32),
        grid=(nb, nk),
        in_specs=[
            pl.BlockSpec((TB, TK), lambda i, k: (i, k)),  # x: streamed f32
            w1_spec,                                      # w1: K-tiled / resident
            resident((1, H1p)),                           # b1
            resident((H1p, H2p)),                         # w2
            resident((1, H2p)),                           # b2
            resident((H2p, Cp)),                          # w3
            resident((1, Cp)),                            # b3
        ],
        out_specs=pl.BlockSpec((TB, C), lambda i, k: (i, 0)),
        scratch_shapes=[pltpu.VMEM((TB, H1p), jnp.float32)],
        compiler_params=pltpu.CompilerParams(
            dimension_semantics=("parallel", "arbitrary"),
            vmem_limit_bytes=vmem_limit,
        ),
        cost_estimate=pl.CostEstimate(
            flops=flops, transcendentals=transcendentals,
            bytes_accessed=bytes_accessed),
    )(x_p, w1_p, b1_p, w2_p, b2_p, w3_p, b3_p)

    return out_p[:B]


def init_params(key, input_dim, hidden_size_1, hidden_size_2, num_classes):
    """Deterministic init mimicking nn.Linear's uniform(-1/sqrt(fan_in), +)."""
    ks = jax.random.split(key, 6)

    def linear(kw, kb, fan_in, fan_out):
        bound = 1.0 / jnp.sqrt(fan_in)
        w = jax.random.uniform(kw, (fan_in, fan_out), jnp.float32, -bound, bound)
        b = jax.random.uniform(kb, (1, fan_out), jnp.float32, -bound, bound)
        return w, b

    w1, b1 = linear(ks[0], ks[1], input_dim, hidden_size_1)
    w2, b2 = linear(ks[2], ks[3], hidden_size_1, hidden_size_2)
    w3, b3 = linear(ks[4], ks[5], hidden_size_2, num_classes)
    return (w1, b1, w2, b2, w3, b3)


if __name__ == "__main__":
    # Small shapes consistent with the module's forward.
    batch = 8
    input_dim = 32
    hidden_size_1 = 64
    hidden_size_2 = 32
    num_classes = 4

    key = jax.random.PRNGKey(0)
    k_x, k_p = jax.random.split(key)
    x = jax.random.normal(k_x, (batch, input_dim), dtype=jnp.float32)
    params = init_params(k_p, input_dim, hidden_size_1, hidden_size_2, num_classes)

    out = simple_linear_model(x, params)
    out = jax.block_until_ready(out)

    # Sanity: reference in plain JAX (eval-mode dropout = identity).
    w1, b1, w2, b2, w3, b3 = params
    h1 = jnp.maximum(x @ w1 + b1, 0.0)
    h2 = jnp.maximum(h1 @ w2 + b2, 0.0)
    ref = jax.nn.sigmoid(h2 @ w3 + b3)
    assert out.shape == (batch, num_classes)
    # bf16 matmul operands (f32 accumulation) -> loosened tolerance vs f32 ref.
    assert jnp.max(jnp.abs(out - ref)) < 2e-2
    print("KERNEL_OK")
</pallas_src>

<mosaic_0001>
module attributes {stable_mosaic.version = 11 : i64} {
  func.func @mlp_kernel(%arg0: i32, %arg1: i32, %arg2: memref<16x128xf32, #tpu.memory_space<vmem>>, %arg3: memref<128x128xbf16, #tpu.memory_space<vmem>>, %arg4: memref<1x128xf32, #tpu.memory_space<vmem>>, %arg5: memref<128x128xbf16, #tpu.memory_space<vmem>>, %arg6: memref<1x128xf32, #tpu.memory_space<vmem>>, %arg7: memref<128x128xbf16, #tpu.memory_space<vmem>>, %arg8: memref<1x128xf32, #tpu.memory_space<vmem>>, %arg9: memref<16x4xf32, #tpu.memory_space<vmem>>, %arg10: memref<16x128xf32, #tpu.memory_space<vmem>>) attributes {dimension_semantics = [#tpu.dimension_semantics<parallel>, #tpu.dimension_semantics<arbitrary>], iteration_bounds = array<i64: 1, 1>, scalar_prefetch = 0 : i64, scratch_operands = 1 : i64, tpu.core_type = #tpu.core_type<tc>, window_params = [{transform_indices = @transform_0, window_bounds = array<i64: 16, 128>}, {pipeline_mode = #tpu.pipeline_mode<synchronous>, transform_indices = @transform_1, window_bounds = array<i64: 128, 128>}, {pipeline_mode = #tpu.pipeline_mode<synchronous>, transform_indices = @transform_2, window_bounds = array<i64: 1, 128>}, {pipeline_mode = #tpu.pipeline_mode<synchronous>, transform_indices = @transform_3, window_bounds = array<i64: 128, 128>}, {pipeline_mode = #tpu.pipeline_mode<synchronous>, transform_indices = @transform_4, window_bounds = array<i64: 1, 128>}, {pipeline_mode = #tpu.pipeline_mode<synchronous>, transform_indices = @transform_5, window_bounds = array<i64: 128, 128>}, {pipeline_mode = #tpu.pipeline_mode<synchronous>, transform_indices = @transform_6, window_bounds = array<i64: 1, 128>}, {transform_indices = @transform_7, window_bounds = array<i64: 16, 4>}]} {
    %c0_i32 = arith.constant 0 : i32
    %0 = arith.cmpi eq, %arg1, %c0_i32 : i32
    %1 = arith.extui %0 : i1 to i32
    %c0_i32_0 = arith.constant 0 : i32
    %2 = arith.cmpi ne, %1, %c0_i32_0 : i32
    scf.if %2 {
      %cst_10 = arith.constant 0.000000e+00 : f32
      %13 = vector.broadcast %cst_10 : f32 to vector<16x128xf32>
      %c0_11 = arith.constant 0 : index
      %c0_12 = arith.constant 0 : index
      %14 = vector.load %arg10[%c0_11, %c0_12] : memref<16x128xf32, #tpu.memory_space<vmem>>, vector<16x128xf32>
      tpu.vector_store %arg10[%c0_11, %c0_12], %13 {strides = array<i32>} : memref<16x128xf32, #tpu.memory_space<vmem>>, vector<16x128xf32>,
    } else {
    }
    %c0 = arith.constant 0 : index
    %c0_1 = arith.constant 0 : index
    %3 = vector.load %arg10[%c0, %c0_1] : memref<16x128xf32, #tpu.memory_space<vmem>>, vector<16x128xf32>
    %c0_2 = arith.constant 0 : index
    %c0_3 = arith.constant 0 : index
    %4 = vector.load %arg2[%c0_2, %c0_3] : memref<16x128xf32, #tpu.memory_space<vmem>>, vector<16x128xf32>
    %5 = arith.truncf %4 : vector<16x128xf32> to vector<16x128xbf16>
    %c0_4 = arith.constant 0 : index
    %c0_5 = arith.constant 0 : index
    %6 = vector.load %arg3[%c0_4, %c0_5] : memref<128x128xbf16, #tpu.memory_space<vmem>>, vector<128x128xbf16>
    %cst = arith.constant dense<0.000000e+00> : vector<16x128xf32>
    %7 = tpu.matmul %5, %6, %cst {dimension_numbers = #tpu.dot_dimension_numbers<[1], [0], [0], [1], [0, 0, 1, 1], [], []>} : vector<16x128xbf16>, vector<128x128xbf16>, vector<16x128xf32> -> vector<16x128xf32>
    %8 = arith.addf %3, %7 : vector<16x128xf32>
    %c0_6 = arith.constant 0 : index
    %c0_7 = arith.constant 0 : index
    %9 = vector.load %arg10[%c0_6, %c0_7] : memref<16x128xf32, #tpu.memory_space<vmem>>, vector<16x128xf32>
    tpu.vector_store %arg10[%c0_6, %c0_7], %8 {strides = array<i32>} : memref<16x128xf32, #tpu.memory_space<vmem>>, vector<16x128xf32>,
    %c0_i32_8 = arith.constant 0 : i32
    %10 = arith.cmpi eq, %arg1, %c0_i32_8 : i32
    %11 = arith.extui %10 : i1 to i32
    %c0_i32_9 = arith.constant 0 : i32
    %12 = arith.cmpi ne, %11, %c0_i32_9 : i32
    scf.if %12 {
      %c0_10 = arith.constant 0 : index
      %c0_11 = arith.constant 0 : index
      %13 = vector.load %arg10[%c0_10, %c0_11] : memref<16x128xf32, #tpu.memory_space<vmem>>, vector<16x128xf32>
      %c0_12 = arith.constant 0 : index
      %c0_13 = arith.constant 0 : index
      %14 = vector.load %arg4[%c0_12, %c0_13] : memref<1x128xf32, #tpu.memory_space<vmem>>, vector<1x128xf32>
      %15 = vector.broadcast %14 : vector<1x128xf32> to vector<16x128xf32>
      %16 = arith.addf %13, %15 : vector<16x128xf32>
      %cst_14 = arith.constant 0.000000e+00 : f32
      %17 = vector.broadcast %cst_14 : f32 to vector<16x128xf32>
      %18 = arith.maximumf %16, %17 : vector<16x128xf32>
      %19 = arith.truncf %18 : vector<16x128xf32> to vector<16x128xbf16>
      %c0_15 = arith.constant 0 : index
      %c0_16 = arith.constant 0 : index
      %20 = vector.load %arg5[%c0_15, %c0_16] : memref<128x128xbf16, #tpu.memory_space<vmem>>, vector<128x128xbf16>
      %cst_17 = arith.constant dense<0.000000e+00> : vector<16x128xf32>
      %21 = tpu.matmul %19, %20, %cst_17 {dimension_numbers = #tpu.dot_dimension_numbers<[1], [0], [0], [1], [0, 0, 1, 1], [], []>} : vector<16x128xbf16>, vector<128x128xbf16>, vector<16x128xf32> -> vector<16x128xf32>
      %c0_18 = arith.constant 0 : index
      %c0_19 = arith.constant 0 : index
      %22 = vector.load %arg6[%c0_18, %c0_19] : memref<1x128xf32, #tpu.memory_space<vmem>>, vector<1x128xf32>
      %23 = vector.broadcast %22 : vector<1x128xf32> to vector<16x128xf32>
      %24 = arith.addf %21, %23 : vector<16x128xf32>
      %cst_20 = arith.constant 0.000000e+00 : f32
      %25 = vector.broadcast %cst_20 : f32 to vector<16x128xf32>
      %26 = arith.maximumf %24, %25 : vector<16x128xf32>
      %27 = arith.truncf %26 : vector<16x128xf32> to vector<16x128xbf16>
      %c0_21 = arith.constant 0 : index
      %c0_22 = arith.constant 0 : index
      %28 = vector.load %arg7[%c0_21, %c0_22] : memref<128x128xbf16, #tpu.memory_space<vmem>>, vector<128x128xbf16>
      %cst_23 = arith.constant dense<0.000000e+00> : vector<16x128xf32>
      %29 = tpu.matmul %27, %28, %cst_23 {dimension_numbers = #tpu.dot_dimension_numbers<[1], [0], [0], [1], [0, 0, 1, 1], [], []>} : vector<16x128xbf16>, vector<128x128xbf16>, vector<16x128xf32> -> vector<16x128xf32>
      %c0_24 = arith.constant 0 : index
      %c0_25 = arith.constant 0 : index
      %30 = vector.load %arg8[%c0_24, %c0_25] : memref<1x128xf32, #tpu.memory_space<vmem>>, vector<1x128xf32>
      %31 = vector.broadcast %30 : vector<1x128xf32> to vector<16x128xf32>
      %32 = arith.addf %29, %31 : vector<16x128xf32>
      %33 = arith.negf %32 : vector<16x128xf32>
      %34 = math.exp %33 : vector<16x128xf32>
      %cst_26 = arith.constant 1.000000e+00 : f32
      %35 = vector.broadcast %cst_26 : f32 to vector<16x128xf32>
      %36 = arith.addf %35, %34 : vector<16x128xf32>
      %37 = arith.divf %35, %36 : vector<16x128xf32>
      %38 = vector.extract_strided_slice %37 {offsets = [0, 0], sizes = [16, 4], strides = [1, 1]} : vector<16x128xf32> to vector<16x4xf32>
      %c0_27 = arith.constant 0 : index
      %c0_28 = arith.constant 0 : index
      %39 = vector.load %arg9[%c0_27, %c0_28] : memref<16x4xf32, #tpu.memory_space<vmem>>, vector<16x4xf32>
      tpu.vector_store %arg9[%c0_27, %c0_28], %38 {strides = array<i32>} : memref<16x4xf32, #tpu.memory_space<vmem>>, vector<16x4xf32>,
    } else {
    }
    return
  }
  func.func @transform_0(%arg0: i32, %arg1: i32) -> (i32, i32) {
    %c0_i32 = arith.constant 0 : i32
    return %arg0, %arg1 : i32, i32
  }
  func.func @transform_1(%arg0: i32, %arg1: i32) -> (i32, i32) {
    %c0_i32 = arith.constant 0 : i32
    %c0_i32_0 = arith.constant 0 : i32
    return %arg1, %c0_i32 : i32, i32
  }
  func.func @transform_2(%arg0: i32, %arg1: i32) -> (i32, i32) {
    %c0_i32 = arith.constant 0 : i32
    %c0_i32_0 = arith.constant 0 : i32
    %c0_i32_1 = arith.constant 0 : i32
    return %c0_i32, %c0_i32_0 : i32, i32
  }
  func.func @transform_3(%arg0: i32, %arg1: i32) -> (i32, i32) {
    %c0_i32 = arith.constant 0 : i32
    %c0_i32_0 = arith.constant 0 : i32
    %c0_i32_1 = arith.constant 0 : i32
    return %c0_i32, %c0_i32_0 : i32, i32
  }
  func.func @transform_4(%arg0: i32, %arg1: i32) -> (i32, i32) {
    %c0_i32 = arith.constant 0 : i32
    %c0_i32_0 = arith.constant 0 : i32
    %c0_i32_1 = arith.constant 0 : i32
    return %c0_i32, %c0_i32_0 : i32, i32
  }
  func.func @transform_5(%arg0: i32, %arg1: i32) -> (i32, i32) {
    %c0_i32 = arith.constant 0 : i32
    %c0_i32_0 = arith.constant 0 : i32
    %c0_i32_1 = arith.constant 0 : i32
    return %c0_i32, %c0_i32_0 : i32, i32
  }
  func.func @transform_6(%arg0: i32, %arg1: i32) -> (i32, i32) {
    %c0_i32 = arith.constant 0 : i32
    %c0_i32_0 = arith.constant 0 : i32
    %c0_i32_1 = arith.constant 0 : i32
    return %c0_i32, %c0_i32_0 : i32, i32
  }
  func.func @transform_7(%arg0: i32, %arg1: i32) -> (i32, i32) {
    %c0_i32 = arith.constant 0 : i32
    %c0_i32_0 = arith.constant 0 : i32
    return %arg0, %c0_i32 : i32, i32
  }
}

</mosaic_0001>

<llo_original>
// kernel: simple_linear_model.1
$region0: #{simple_linear_model.1}
  #allocation0 [shape = 'u32[]', space=smem, size = 0x4, offset = 0x4, fixed_abs, tag = 'smem constant byte address 0x4 - core index']
  #allocation1 [shape = 'u32[72,128]{1,0:T(1,128)}', space=vmem, size = 0x9000, scoped, tag = 'internal scratch']
  #allocation2 [shape = 'f32[16,128]{1,0:T(8,128)}', space=vmem, size = 0x2000, scoped, tag = 'scratch operand']
  %s0 = inlined_call_operand.vmem [shape: f32[16,128], index: 0, kind: input, shape index: {}]
  %s1 = inlined_call_operand.vmem [shape: bf16[128,128], index: 1, kind: input, shape index: {}]
  %s2 = inlined_call_operand.vmem [shape: f32[1,128], index: 2, kind: input, shape index: {}]
  %s3 = inlined_call_operand.vmem [shape: bf16[128,128], index: 3, kind: input, shape index: {}]
  %s4 = inlined_call_operand.vmem [shape: f32[1,128], index: 4, kind: input, shape index: {}]
  %s5 = inlined_call_operand.vmem [shape: bf16[128,128], index: 5, kind: input, shape index: {}]
  %s6 = inlined_call_operand.vmem [shape: f32[1,128], index: 6, kind: input, shape index: {}]
  %s7 = inlined_call_operand.vmem [shape: f32[16,4], index: 7, kind: output, shape index: {}]
  %s8 = sld [smem:[#allocation0]]
  $region46: #{simple_linear_model.1} parent=0
    _
  %s10 = ssub.s32 1, %s8
  %s11 = scalar_select 0, %s10, %s8
  // Predicated region
  $region2: #{simple_linear_model.1} parent=0 // pred_check
    _
  $region3: #{simple_linear_model.1} parent=0 // pred_check_branch
    %13 = sbr.rel (0) target = $region5
  $region4: #{simple_linear_model.1} parent=0 // pred_region
    _
  $region5: #{simple_linear_model.1} parent=0 // pred_fallthru
    _
  // Predicated region
  $region6: #{simple_linear_model.1} parent=0 // pred_check
    _
  $region7: #{simple_linear_model.1} parent=0 // pred_check_branch
    %15 = sbr.rel (0) target = $region9
  $region8: #{simple_linear_model.1} parent=0 // pred_region
    _
  $region9: #{simple_linear_model.1} parent=0 // pred_fallthru
    _
  // Predicated region
  $region10: #{simple_linear_model.1} parent=0 // pred_check
    _
  $region11: #{simple_linear_model.1} parent=0 // pred_check_branch
    %17 = sbr.rel (0) target = $region13
  $region12: #{simple_linear_model.1} parent=0 // pred_region
    _
  $region13: #{simple_linear_model.1} parent=0 // pred_fallthru
    _
  // Predicated region
  $region14: #{simple_linear_model.1} parent=0 // pred_check
    _
  $region15: #{simple_linear_model.1} parent=0 // pred_check_branch
    %19 = sbr.rel (0) target = $region17
  $region16: #{simple_linear_model.1} parent=0 // pred_region
    _
  $region17: #{simple_linear_model.1} parent=0 // pred_fallthru
    _
  // Predicated region
  $region18: #{simple_linear_model.1} parent=0 // pred_check
    _
  $region19: #{simple_linear_model.1} parent=0 // pred_check_branch
    %21 = sbr.rel (0) target = $region21
  $region20: #{simple_linear_model.1} parent=0 // pred_region
    _
  $region21: #{simple_linear_model.1} parent=0 // pred_fallthru
    _
  // Predicated region
  $region22: #{simple_linear_model.1} parent=0 // pred_check
    _
  $region23: #{simple_linear_model.1} parent=0 // pred_check_branch
    %23 = sbr.rel (0) target = $region25
  $region24: #{simple_linear_model.1} parent=0 // pred_region
    _
  $region25: #{simple_linear_model.1} parent=0 // pred_fallthru
    _
  // Predicated region
  $region26: #{simple_linear_model.1} parent=0 // pred_check
    _
  $region27: #{simple_linear_model.1} parent=0 // pred_check_branch
    %25 = sbr.rel (0) target = $region29
  $region28: #{simple_linear_model.1} parent=0 // pred_region
    _
  $region29: #{simple_linear_model.1} parent=0 // pred_fallthru
    _
  %p26 = scmp.eq.s32.totalorder 0, 0
  // Predicated region
  $region30: #{simple_linear_model.1} parent=0 // pred_check
    %p27 = pneg %p26
  $region31: #{simple_linear_model.1} parent=0 // pred_check_branch
    %29 = sbr.rel (%p27) target = $region33
  $region32: #{simple_linear_model.1} parent=0 // pred_region
    %30 = vst [vmem:[#allocation2] sm:$0xff] 0.0
    %31 = vst [vmem:[#allocation2 + $0x8] sm:$0xff] 0.0
  $region33: #{simple_linear_model.1} parent=0 // pred_fallthru
    _
  %v32 = vld [vmem:[#allocation2] sm:$0xff]
  %v33 = vld [vmem:[#allocation2 + $0x8] sm:$0xff]
  %v34 = vld [vmem:[%s0] sm:$0xff]
  %v35 = vld [vmem:[%s0 + $0x8] sm:$0xff]
  %v36 = vpack.c.bf16 %v35, %v34
  %v37 = vld [vmem:[%s1] sm:$0xf]
  %v38 = vld [vmem:[%s1 + $0x4] sm:$0xf]
  %v39 = vld [vmem:[%s1 + $0x8] sm:$0xf]
  %v40 = vld [vmem:[%s1 + $0xc] sm:$0xf]
  %v41 = vld [vmem:[%s1 + $0x10] sm:$0xf]
  %v42 = vld [vmem:[%s1 + $0x14] sm:$0xf]
  %v43 = vld [vmem:[%s1 + $0x18] sm:$0xf]
  %v44 = vld [vmem:[%s1 + $0x1c] sm:$0xf]
  %v45 = vld [vmem:[%s1 + $0x20] sm:$0xf]
  %v46 = vld [vmem:[%s1 + $0x24] sm:$0xf]
  %v47 = vld [vmem:[%s1 + $0x28] sm:$0xf]
  %v48 = vld [vmem:[%s1 + $0x2c] sm:$0xf]
  %v49 = vld [vmem:[%s1 + $0x30] sm:$0xf]
  %v50 = vld [vmem:[%s1 + $0x34] sm:$0xf]
  %v51 = vld [vmem:[%s1 + $0x38] sm:$0xf]
  %v52 = vld [vmem:[%s1 + $0x3c] sm:$0xf]
  %v69 = vunpack.c.l.b16 %v37
  %v70 = vunpack.c.l.b16 %v38
  %v71 = vunpack.c.l.b16 %v39
  %v72 = vunpack.c.l.b16 %v40
  %v73 = vunpack.c.l.b16 %v41
  %v74 = vunpack.c.l.b16 %v42
  %v75 = vunpack.c.l.b16 %v43
  %v76 = vunpack.c.l.b16 %v44
  %v77 = vunpack.c.l.b16 %v45
  %v78 = vunpack.c.l.b16 %v46
  %v79 = vunpack.c.l.b16 %v47
  %v80 = vunpack.c.l.b16 %v48
  %v81 = vunpack.c.l.b16 %v49
  %v82 = vunpack.c.l.b16 %v50
  %v83 = vunpack.c.l.b16 %v51
  %v84 = vunpack.c.l.b16 %v52
  %v85 = vpack.c.b16 %v70, %v69
  %v86 = vpack.c.b16 %v72, %v71
  %v87 = vpack.c.b16 %v74, %v73
  %v88 = vpack.c.b16 %v76, %v75
  %v89 = vpack.c.b16 %v78, %v77
  %v90 = vpack.c.b16 %v80, %v79
  %v91 = vpack.c.b16 %v82, %v81
  %v92 = vpack.c.b16 %v84, %v83
  %101 = vmatpush.bf16.msra.mxu0 %v92
  %102 = vmatpush.bf16.msra.mxu0 %v91
  %103 = vmatpush.bf16.msra.mxu0 %v90
  %104 = vmatpush.bf16.msra.mxu0 %v89
  %105 = vmatpush.bf16.msra.mxu0 %v88
  %106 = vmatpush.bf16.msra.mxu0 %v87
  %107 = vmatpush.bf16.msra.mxu0 %v86
  %108 = vmatpush.bf16.msra.mxu0 %v85
  %109 = vmatmul.bf16.gmra.mxu0 %v36
  %v110 = vpop.f32.mrf.mxu0
  %v111 = vadd.f32 0.0, %v110
  %v112 = vpop.f32.mrf.mxu0
  %v113 = vadd.f32 0.0, %v112
  %114 = vdwg.mxu0
  %v115 = vadd.f32 %v32, %v111
  %v116 = vadd.f32 %v33, %v113
  %117 = vst [vmem:[#allocation2] sm:$0xff] %v115
  %118 = vst [vmem:[#allocation2 + $0x8] sm:$0xff] %v116
  // Predicated region
  $region34: #{simple_linear_model.1} parent=0 // pred_check
    %p119 = pneg %p26
  $region35: #{simple_linear_model.1} parent=0 // pred_check_branch
    %121 = sbr.rel (%p119) target = $region37
  $region36: #{simple_linear_model.1} parent=0 // pred_region
    %v122 = vld [vmem:[#allocation2] sm:$0xff]
    %v123 = vld [vmem:[#allocation2 + $0x8] sm:$0xff]
    %v124 = vld [vmem:[%s2] sm:$0x1]
    %v126 = vperm.slane %v124, 0
    %v128 = vadd.f32 %v122, %v126
    %v129 = vadd.f32 %v123, %v126
    %v130 = vmax.f32 %v128, 0.0
    %v131 = vmax.f32 %v129, 0.0
    %v132 = vpack.c.bf16 %v131, %v130
    %v133 = vld [vmem:[%s3] sm:$0xf]
    %v134 = vld [vmem:[%s3 + $0x4] sm:$0xf]
    %v135 = vld [vmem:[%s3 + $0x8] sm:$0xf]
    %v136 = vld [vmem:[%s3 + $0xc] sm:$0xf]
    %v137 = vld [vmem:[%s3 + $0x10] sm:$0xf]
    %v138 = vld [vmem:[%s3 + $0x14] sm:$0xf]
    %v139 = vld [vmem:[%s3 + $0x18] sm:$0xf]
    %v140 = vld [vmem:[%s3 + $0x1c] sm:$0xf]
    %v141 = vld [vmem:[%s3 + $0x20] sm:$0xf]
    %v142 = vld [vmem:[%s3 + $0x24] sm:$0xf]
    %v143 = vld [vmem:[%s3 + $0x28] sm:$0xf]
    %v144 = vld [vmem:[%s3 + $0x2c] sm:$0xf]
    %v145 = vld [vmem:[%s3 + $0x30] sm:$0xf]
    %v146 = vld [vmem:[%s3 + $0x34] sm:$0xf]
    %v147 = vld [vmem:[%s3 + $0x38] sm:$0xf]
    %v148 = vld [vmem:[%s3 + $0x3c] sm:$0xf]
    %v149 = vld [vmem:[%s4] sm:$0x1]
    %v151 = vperm.slane %v149, 0
    %v169 = vunpack.c.l.b16 %v133
    %v170 = vunpack.c.l.b16 %v134
    %v171 = vunpack.c.l.b16 %v135
    %v172 = vunpack.c.l.b16 %v136
    %v173 = vunpack.c.l.b16 %v137
    %v174 = vunpack.c.l.b16 %v138
    %v175 = vunpack.c.l.b16 %v139
    %v176 = vunpack.c.l.b16 %v140
    %v177 = vunpack.c.l.b16 %v141
    %v178 = vunpack.c.l.b16 %v142
    %v179 = vunpack.c.l.b16 %v143
    %v180 = vunpack.c.l.b16 %v144
    %v181 = vunpack.c.l.b16 %v145
    %v182 = vunpack.c.l.b16 %v146
    %v183 = vunpack.c.l.b16 %v147
    %v184 = vunpack.c.l.b16 %v148
    %v185 = vpack.c.b16 %v170, %v169
    %v186 = vpack.c.b16 %v172, %v171
    %v187 = vpack.c.b16 %v174, %v173
    %v188 = vpack.c.b16 %v176, %v175
    %v189 = vpack.c.b16 %v178, %v177
    %v190 = vpack.c.b16 %v180, %v179
    %v191 = vpack.c.b16 %v182, %v181
    %v192 = vpack.c.b16 %v184, %v183
    %201 = vmatpush.bf16.msra.mxu0 %v192
    %202 = vmatpush.bf16.msra.mxu0 %v191
    %203 = vmatpush.bf16.msra.mxu0 %v190
    %204 = vmatpush.bf16.msra.mxu0 %v189
    %205 = vmatpush.bf16.msra.mxu0 %v188
    %206 = vmatpush.bf16.msra.mxu0 %v187
    %207 = vmatpush.bf16.msra.mxu0 %v186
    %208 = vmatpush.bf16.msra.mxu0 %v185
    %209 = vmatmul.bf16.gmra.mxu0 %v132
    %v210 = vpop.f32.mrf.mxu0
    %v211 = vadd.f32 %v151, %v210
    %v212 = vpop.f32.mrf.mxu0
    %v213 = vadd.f32 %v151, %v212
    %214 = vdwg.mxu0
    %v215 = vmax.f32 %v211, 0.0
    %v216 = vmax.f32 %v213, 0.0
    %v217 = vpack.c.bf16 %v216, %v215
    %v218 = vld [vmem:[%s5] sm:$0xf]
    %v219 = vld [vmem:[%s5 + $0x4] sm:$0xf]
    %v220 = vld [vmem:[%s5 + $0x8] sm:$0xf]
    %v221 = vld [vmem:[%s5 + $0xc] sm:$0xf]
    %v222 = vld [vmem:[%s5 + $0x10] sm:$0xf]
    %v223 = vld [vmem:[%s5 + $0x14] sm:$0xf]
    %v224 = vld [vmem:[%s5 + $0x18] sm:$0xf]
    %v225 = vld [vmem:[%s5 + $0x1c] sm:$0xf]
    %v226 = vld [vmem:[%s5 + $0x20] sm:$0xf]
    %v227 = vld [vmem:[%s5 + $0x24] sm:$0xf]
    %v228 = vld [vmem:[%s5 + $0x28] sm:$0xf]
    %v229 = vld [vmem:[%s5 + $0x2c] sm:$0xf]
    %v230 = vld [vmem:[%s5 + $0x30] sm:$0xf]
    %v231 = vld [vmem:[%s5 + $0x34] sm:$0xf]
    %v232 = vld [vmem:[%s5 + $0x38] sm:$0xf]
    %v233 = vld [vmem:[%s5 + $0x3c] sm:$0xf]
    %v234 = vld [vmem:[%s6] sm:$0x1]
    %v236 = vperm.slane %v234, 0
    %v254 = vunpack.c.l.b16 %v218
    %v255 = vunpack.c.l.b16 %v219
    %v256 = vunpack.c.l.b16 %v220
    %v257 = vunpack.c.l.b16 %v221
    %v258 = vunpack.c.l.b16 %v222
    %v259 = vunpack.c.l.b16 %v223
    %v260 = vunpack.c.l.b16 %v224
    %v261 = vunpack.c.l.b16 %v225
    %v262 = vunpack.c.l.b16 %v226
    %v263 = vunpack.c.l.b16 %v227
    %v264 = vunpack.c.l.b16 %v228
    %v265 = vunpack.c.l.b16 %v229
    %v266 = vunpack.c.l.b16 %v230
    %v267 = vunpack.c.l.b16 %v231
    %v268 = vunpack.c.l.b16 %v232
    %v269 = vunpack.c.l.b16 %v233
    %v270 = vpack.c.b16 %v255, %v254
    %v271 = vpack.c.b16 %v257, %v256
    %v272 = vpack.c.b16 %v259, %v258
    %v273 = vpack.c.b16 %v261, %v260
    %v274 = vpack.c.b16 %v263, %v262
    %v275 = vpack.c.b16 %v265, %v264
    %v276 = vpack.c.b16 %v267, %v266
    %v277 = vpack.c.b16 %v269, %v268
    %286 = vmatpush.bf16.msra.mxu0 %v277
    %287 = vmatpush.bf16.msra.mxu0 %v276
    %288 = vmatpush.bf16.msra.mxu0 %v275
    %289 = vmatpush.bf16.msra.mxu0 %v274
    %290 = vmatpush.bf16.msra.mxu0 %v273
    %291 = vmatpush.bf16.msra.mxu0 %v272
    %292 = vmatpush.bf16.msra.mxu0 %v271
    %293 = vmatpush.bf16.msra.mxu0 %v270
    %294 = vmatmul.bf16.gmra.mxu0 %v217
    %v295 = vpop.f32.mrf.mxu0
    %v296 = vadd.f32 %v236, %v295
    %v297 = vpop.f32.mrf.mxu0
    %v298 = vadd.f32 %v236, %v297
    %299 = vdwg.mxu0
    %v300 = vxor.u32 %v296, 2147483648
    %v301 = vxor.u32 %v298, 2147483648
    %v302 = vmul.f32 %v300, 1.442695
    %v303 = vpow.pop %v302
    %v304 = vmul.f32 %v301, 1.442695
    %v305 = vpow.pop %v304
    %v306 = vadd.f32 %v303, 1.0
    %v307 = vadd.f32 %v305, 1.0
    %v308 = vrcp.pop %v306
    %v309 = vmul.f32 %v306, %v308
    %v310 = vsub.f32 1.0, %v309
    %v311 = vmul.f32 %v308, %v310
    %v312 = vadd.f32 %v308, %v311
    %vm313 = vweird.f32 %v306
    %vm314 = vweird.f32 %v308
    %vm315 = vmor %vm313, %vm314
    %v316 = vsel %vm315, %v308, %v312
    %v317 = vand.u32 2147483647, %v306
    %vm318 = vcmp.eq.f32.partialorder %v317, 8.507059e+37
    %v319 = vand.u32 %v306, 2147483648
    %v320 = vor.u32 1.1754944e-38, %v319
    %v321 = vsel %vm318, %v320, %v316
    %v322 = vmul.f32 1.0, %v321
    %v323 = vrcp.pop %v307
    %v324 = vmul.f32 %v307, %v323
    %v325 = vsub.f32 1.0, %v324
    %v326 = vmul.f32 %v323, %v325
    %v327 = vadd.f32 %v323, %v326
    %vm328 = vweird.f32 %v307
    %vm329 = vweird.f32 %v323
    %vm330 = vmor %vm328, %vm329
    %v331 = vsel %vm330, %v323, %v327
    %v332 = vand.u32 2147483647, %v307
    %vm333 = vcmp.eq.f32.partialorder %v332, 8.507059e+37
    %v334 = vand.u32 %v307, 2147483648
    %v335 = vor.u32 1.1754944e-38, %v334
    %v336 = vsel %vm333, %v335, %v331
    %v337 = vmul.f32 1.0, %v336
    %vm338 = vcmask 31744
    %339 = vst.msk [vmem:[%s7] sm:$0xff] %vm338, %v322
    %340 = vst.msk [vmem:[%s7 + $0x8] sm:$0xff] %vm338, %v337
  $region37: #{simple_linear_model.1} parent=0 // pred_fallthru
    _
  // Predicated region
  $region38: #{simple_linear_model.1} parent=0 // pred_check
    _
  $region39: #{simple_linear_model.1} parent=0 // pred_check_branch
    %342 = sbr.rel (0) target = $region41
  $region40: #{simple_linear_model.1} parent=0 // pred_region
    _
  $region41: #{simple_linear_model.1} parent=0 // pred_fallthru
    _
  // Predicated region
  $region42: #{simple_linear_model.1} parent=0 // pred_check
    _
  $region43: #{simple_linear_model.1} parent=0 // pred_check_branch
    %344 = sbr.rel (0) target = $region45
  $region44: #{simple_linear_model.1} parent=0 // pred_region
    _
  $region45: #{simple_linear_model.1} parent=0 // pred_fallthru
    _

</llo_original>
